<compile_context>
chip_gen: v6e
topology: v6e:2x2x1
jax: 0.10.0
libtpu: 0.0.40
codegen_flags: <defaults>
</compile_context>

<pallas_src>
import jax
import jax.numpy as jnp
from jax import lax
from jax.experimental import pallas as pl
from jax.experimental.pallas import tpu as pltpu

BN_EPS = 0.8        # nn.BatchNorm2d(out_filters, 0.8) -> eps = 0.8
LEAKY_SLOPE = 0.2


def _round_up(x, m):
    return ((x + m - 1) // m) * m


# ----------------------------------------------------------------------------
# Pallas kernels
# ----------------------------------------------------------------------------
def _conv_block_kernel(patch_ref, w_ref, bias_ref, scale_ref, shift_ref, out_ref):
    """Fused conv-as-matmul + bias + LeakyReLU(0.2) + BatchNorm (scale/shift)."""
    acc = jnp.dot(patch_ref[...], w_ref[...], preferred_element_type=jnp.float32)
    acc = acc + bias_ref[...]                               # (1, N) broadcast
    acc = jnp.where(acc >= 0.0, acc, LEAKY_SLOPE * acc)     # LeakyReLU(0.2)
    # TODO(synk): Dropout2d(0.25) is an inference-mode no-op here; training-mode
    # channel dropout would use pltpu.prng_seed / prng_random_bits.
    acc = acc * scale_ref[...] + shift_ref[...]             # eval-mode BatchNorm
    out_ref[...] = acc.astype(out_ref.dtype)


def _adv_kernel(x_ref, w_ref, b_ref, out_ref):
    """Fused Linear + Sigmoid head."""
    logits = jnp.dot(x_ref[...], w_ref[...], preferred_element_type=jnp.float32)
    logits = logits + b_ref[...]
    out_ref[...] = (1.0 / (1.0 + jnp.exp(-logits))).astype(out_ref.dtype)


# ----------------------------------------------------------------------------
# Wrappers
# ----------------------------------------------------------------------------
def _im2col(x, ksize=3, stride=2, pad=1):
    """(B, C, H, W) -> patches (B*Ho*Wo, C*ksize*ksize) in PyTorch weight order."""
    B, C, H, W = x.shape
    Ho = (H + 2 * pad - ksize) // stride + 1
    Wo = (W + 2 * pad - ksize) // stride + 1
    xp = jnp.pad(x, ((0, 0), (0, 0), (pad, pad), (pad, pad)))
    cols = []
    for dy in range(ksize):
        for dx in range(ksize):
            cols.append(xp[:, :, dy:dy + stride * Ho:stride,
                              dx:dx + stride * Wo:stride])          # (B,C,Ho,Wo)
    patches = jnp.stack(cols, axis=0)                               # (k*k,B,C,Ho,Wo)
    patches = patches.reshape(ksize, ksize, B, C, Ho, Wo)
    patches = patches.transpose(2, 4, 5, 3, 0, 1)                   # (B,Ho,Wo,C,ky,kx)
    patches = patches.reshape(B * Ho * Wo, C * ksize * ksize)
    return patches, Ho, Wo


def _conv_block(x, w, b, gamma, beta, mean, var, use_bn, tile_m_max=512):
    """One discriminator block: conv(3,2,1) + LeakyReLU + [BN], via one kernel."""
    B, Cin, H, W = x.shape
    Cout = w.shape[0]

    patches, Ho, Wo = _im2col(x)              # (M, K0)
    M, K0 = patches.shape
    K = _round_up(K0, 8)                      # sublane-friendly contraction dim
    N = _round_up(Cout, 128)                  # lane-dense output channels
    tile_m = min(tile_m_max, _round_up(M, 8))
    M_pad = _round_up(M, tile_m)

    patches = jnp.pad(patches, ((0, M_pad - M), (0, K - K0)))
    w_mat = jnp.pad(w.reshape(Cout, K0).T, ((0, K - K0), (0, N - Cout)))
    bias = jnp.pad(b, (0, N - Cout)).reshape(1, N)

    if use_bn:
        inv_std = 1.0 / jnp.sqrt(var + BN_EPS)
        scale = gamma * inv_std
        shift = beta - mean * scale
    else:
        scale = jnp.ones((Cout,), jnp.float32)
        shift = jnp.zeros((Cout,), jnp.float32)
    scale = jnp.pad(scale, (0, N - Cout), constant_values=1.0).reshape(1, N)
    shift = jnp.pad(shift, (0, N - Cout)).reshape(1, N)

    out = pl.pallas_call(
        _conv_block_kernel,
        out_shape=jax.ShapeDtypeStruct((M_pad, N), jnp.float32),
        grid=(M_pad // tile_m,),
        in_specs=[
            pl.BlockSpec((tile_m, K), lambda i: (i, 0)),
            pl.BlockSpec((K, N), lambda i: (0, 0)),
            pl.BlockSpec((1, N), lambda i: (0, 0)),
            pl.BlockSpec((1, N), lambda i: (0, 0)),
            pl.BlockSpec((1, N), lambda i: (0, 0)),
        ],
        out_specs=pl.BlockSpec((tile_m, N), lambda i: (i, 0)),
        compiler_params=pltpu.CompilerParams(dimension_semantics=("parallel",)),
    )(patches, w_mat, bias, scale, shift)

    out = out[:M, :Cout]                                            # (B*Ho*Wo, Cout)
    return out.reshape(B, Ho, Wo, Cout).transpose(0, 3, 1, 2)       # NCHW


def _adv_layer(feat, w, b):
    """Linear(F, 1) + Sigmoid, lane/sublane padded for clean tiles."""
    B, F = feat.shape
    Bp = _round_up(B, 8)
    Fp = _round_up(F, 128)
    Np = 128
    x = jnp.pad(feat, ((0, Bp - B), (0, Fp - F)))
    wp = jnp.pad(w, ((0, Fp - F), (0, Np - 1)))
    bp = jnp.pad(b.reshape(1, 1), ((0, 0), (0, Np - 1)))

    out = pl.pallas_call(
        _adv_kernel,
        out_shape=jax.ShapeDtypeStruct((Bp, Np), jnp.float32),
        grid=(1,),
        in_specs=[
            pl.BlockSpec((Bp, Fp), lambda i: (0, 0)),
            pl.BlockSpec((Fp, Np), lambda i: (0, 0)),
            pl.BlockSpec((1, Np), lambda i: (0, 0)),
        ],
        out_specs=pl.BlockSpec((Bp, Np), lambda i: (0, 0)),
    )(x, wp, bp)
    return out[:B, :1]


def discriminator_forward(img, params):
    """Forward pass of the PyTorch Discriminator (inference semantics)."""
    x = img.astype(jnp.float32)
    for blk in params["blocks"]:
        x = _conv_block(
            x, blk["w"], blk["b"],
            blk.get("gamma"), blk.get("beta"), blk.get("mean"), blk.get("var"),
            use_bn=blk["bn"],
        )
    B = x.shape[0]
    feat = x.reshape(B, -1)                  # matches out.view(B, -1) on NCHW
    return _adv_layer(feat, params["adv_w"], params["adv_b"])


# ----------------------------------------------------------------------------
# Pure-JAX reference (lax.conv) for correctness checking
# ----------------------------------------------------------------------------
def _discriminator_ref(img, params):
    x = img.astype(jnp.float32)
    for blk in params["blocks"]:
        x = lax.conv_general_dilated(
            x, blk["w"], window_strides=(2, 2), padding=((1, 1), (1, 1)),
            dimension_numbers=("NCHW", "OIHW", "NCHW"),
            precision=lax.Precision.HIGHEST)
        x = x + blk["b"][None, :, None, None]
        x = jnp.where(x >= 0.0, x, LEAKY_SLOPE * x)
        if blk["bn"]:
            inv = 1.0 / jnp.sqrt(blk["var"] + BN_EPS)
            scale = (blk["gamma"] * inv)[None, :, None, None]
            x = (x - blk["mean"][None, :, None, None]) * scale \
                + blk["beta"][None, :, None, None]
    B = x.shape[0]
    feat = x.reshape(B, -1)
    logits = jnp.dot(feat, params["adv_w"], precision=lax.Precision.HIGHEST)
    logits = logits + params["adv_b"]
    return 1.0 / (1.0 + jnp.exp(-logits))


# ----------------------------------------------------------------------------
# Parameter init (deterministic)
# ----------------------------------------------------------------------------
def init_params(key, channels=1, img_size=(16, 16)):
    # bn flags: first block bn=False; later blocks bn=True (batch_size > 1).
    specs = [(channels, 16, False), (16, 32, True), (32, 64, True), (64, 128, True)]
    params = {"blocks": []}
    for cin, cout, bn in specs:
        key, k1, k2, k3, k4, k5, k6 = jax.random.split(key, 7)
        blk = {
            "w": jax.random.normal(k1, (cout, cin, 3, 3), jnp.float32)
                 * (1.0 / jnp.sqrt(cin * 9.0)),
            "b": 0.05 * jax.random.normal(k2, (cout,), jnp.float32),
            "bn": bn,
        }
        if bn:
            blk["gamma"] = 1.0 + 0.1 * jax.random.normal(k3, (cout,), jnp.float32)
            blk["beta"] = 0.1 * jax.random.normal(k4, (cout,), jnp.float32)
            blk["mean"] = 0.1 * jax.random.normal(k5, (cout,), jnp.float32)
            blk["var"] = jax.random.uniform(k6, (cout,), jnp.float32, 0.5, 1.5)
        params["blocks"].append(blk)

    ds_w = img_size[0] // 16
    ds_h = img_size[1] // 16
    F = 128 * ds_w * ds_h
    key, k1, k2 = jax.random.split(key, 3)
    params["adv_w"] = jax.random.normal(k1, (F, 1), jnp.float32) / jnp.sqrt(float(F))
    params["adv_b"] = 0.05 * jax.random.normal(k2, (1,), jnp.float32)
    return params


if __name__ == "__main__":
    key = jax.random.PRNGKey(0)
    kp, kx = jax.random.split(key)

    B, C, H, W = 2, 1, 16, 16                 # small shapes; 16 -> 8 -> 4 -> 2 -> 1
    params = init_params(kp, channels=C, img_size=(H, W))
    img = jax.random.normal(kx, (B, C, H, W), jnp.float32)

    out = jax.block_until_ready(discriminator_forward(img, params))
    ref = jax.block_until_ready(_discriminator_ref(img, params))

    assert out.shape == (B, 1), out.shape
    assert jnp.allclose(out, ref, rtol=2e-3, atol=2e-3), (out, ref)
    print("KERNEL_OK")
</pallas_src>

<mosaic_0001>
module attributes {stable_mosaic.version = 11 : i64} {
  func.func @_conv_block_kernel(%arg0: i32, %arg1: memref<128x16xf32, #tpu.memory_space<vmem>>, %arg2: memref<16x128xf32, #tpu.memory_space<vmem>>, %arg3: memref<1x128xf32, #tpu.memory_space<vmem>>, %arg4: memref<1x128xf32, #tpu.memory_space<vmem>>, %arg5: memref<1x128xf32, #tpu.memory_space<vmem>>, %arg6: memref<128x128xf32, #tpu.memory_space<vmem>>) attributes {dimension_semantics = [#tpu.dimension_semantics<parallel>], iteration_bounds = array<i64: 1>, scalar_prefetch = 0 : i64, scratch_operands = 0 : i64, tpu.core_type = #tpu.core_type<tc>, window_params = [{transform_indices = @transform_0, window_bounds = array<i64: 128, 16>}, {pipeline_mode = #tpu.pipeline_mode<synchronous>, transform_indices = @transform_1, window_bounds = array<i64: 16, 128>}, {pipeline_mode = #tpu.pipeline_mode<synchronous>, transform_indices = @transform_2, window_bounds = array<i64: 1, 128>}, {pipeline_mode = #tpu.pipeline_mode<synchronous>, transform_indices = @transform_3, window_bounds = array<i64: 1, 128>}, {pipeline_mode = #tpu.pipeline_mode<synchronous>, transform_indices = @transform_4, window_bounds = array<i64: 1, 128>}, {transform_indices = @transform_5, window_bounds = array<i64: 128, 128>}]} {
    %c0 = arith.constant 0 : index
    %c0_0 = arith.constant 0 : index
    %0 = vector.load %arg1[%c0, %c0_0] : memref<128x16xf32, #tpu.memory_space<vmem>>, vector<128x16xf32>
    %c0_1 = arith.constant 0 : index
    %c0_2 = arith.constant 0 : index
    %1 = vector.load %arg2[%c0_1, %c0_2] : memref<16x128xf32, #tpu.memory_space<vmem>>, vector<16x128xf32>
    %cst = arith.constant dense<0.000000e+00> : vector<128x128xf32>
    %2 = tpu.matmul %0, %1, %cst {dimension_numbers = #tpu.dot_dimension_numbers<[1], [0], [0], [1], [0, 0, 1, 1], [], []>} : vector<128x16xf32>, vector<16x128xf32>, vector<128x128xf32> -> vector<128x128xf32>
    %c0_3 = arith.constant 0 : index
    %c0_4 = arith.constant 0 : index
    %3 = vector.load %arg3[%c0_3, %c0_4] : memref<1x128xf32, #tpu.memory_space<vmem>>, vector<1x128xf32>
    %4 = vector.broadcast %3 : vector<1x128xf32> to vector<128x128xf32>
    %5 = arith.addf %2, %4 : vector<128x128xf32>
    %cst_5 = arith.constant 0.000000e+00 : f32
    %6 = vector.broadcast %cst_5 : f32 to vector<128x128xf32>
    %7 = arith.cmpf oge, %5, %6 : vector<128x128xf32>
    %cst_6 = arith.constant 2.000000e-01 : f32
    %8 = vector.broadcast %cst_6 : f32 to vector<128x128xf32>
    %9 = arith.mulf %8, %5 : vector<128x128xf32>
    %10 = arith.select %7, %5, %9 : vector<128x128xi1>, vector<128x128xf32>
    %c0_7 = arith.constant 0 : index
    %c0_8 = arith.constant 0 : index
    %11 = vector.load %arg4[%c0_7, %c0_8] : memref<1x128xf32, #tpu.memory_space<vmem>>, vector<1x128xf32>
    %12 = vector.broadcast %11 : vector<1x128xf32> to vector<128x128xf32>
    %13 = arith.mulf %10, %12 : vector<128x128xf32>
    %c0_9 = arith.constant 0 : index
    %c0_10 = arith.constant 0 : index
    %14 = vector.load %arg5[%c0_9, %c0_10] : memref<1x128xf32, #tpu.memory_space<vmem>>, vector<1x128xf32>
    %15 = vector.broadcast %14 : vector<1x128xf32> to vector<128x128xf32>
    %16 = arith.addf %13, %15 : vector<128x128xf32>
    %c0_11 = arith.constant 0 : index
    %c0_12 = arith.constant 0 : index
    %17 = vector.load %arg6[%c0_11, %c0_12] : memref<128x128xf32, #tpu.memory_space<vmem>>, vector<128x128xf32>
    tpu.vector_store %arg6[%c0_11, %c0_12], %16 {strides = array<i32>} : memref<128x128xf32, #tpu.memory_space<vmem>>, vector<128x128xf32>,
    return
  }
  func.func @transform_0(%arg0: i32) -> (i32, i32) {
    %c0_i32 = arith.constant 0 : i32
    %c0_i32_0 = arith.constant 0 : i32
    return %arg0, %c0_i32 : i32, i32
  }
  func.func @transform_1(%arg0: i32) -> (i32, i32) {
    %c0_i32 = arith.constant 0 : i32
    %c0_i32_0 = arith.constant 0 : i32
    %c0_i32_1 = arith.constant 0 : i32
    return %c0_i32, %c0_i32_0 : i32, i32
  }
  func.func @transform_2(%arg0: i32) -> (i32, i32) {
    %c0_i32 = arith.constant 0 : i32
    %c0_i32_0 = arith.constant 0 : i32
    %c0_i32_1 = arith.constant 0 : i32
    return %c0_i32, %c0_i32_0 : i32, i32
  }
  func.func @transform_3(%arg0: i32) -> (i32, i32) {
    %c0_i32 = arith.constant 0 : i32
    %c0_i32_0 = arith.constant 0 : i32
    %c0_i32_1 = arith.constant 0 : i32
    return %c0_i32, %c0_i32_0 : i32, i32
  }
  func.func @transform_4(%arg0: i32) -> (i32, i32) {
    %c0_i32 = arith.constant 0 : i32
    %c0_i32_0 = arith.constant 0 : i32
    %c0_i32_1 = arith.constant 0 : i32
    return %c0_i32, %c0_i32_0 : i32, i32
  }
  func.func @transform_5(%arg0: i32) -> (i32, i32) {
    %c0_i32 = arith.constant 0 : i32
    %c0_i32_0 = arith.constant 0 : i32
    return %arg0, %c0_i32 : i32, i32
  }
}

</mosaic_0001>

<llo_original>
// kernel: tpu_custom_call.1
$region0: #{tpu_custom_call.1}
  #allocation0 [shape = 'u32[]', space=smem, size = 0x4, offset = 0x4, fixed_abs, tag = 'smem constant byte address 0x4 - core index']
  #allocation1 [shape = 'u32[144,128]{1,0:T(1,128)}', space=vmem, size = 0x12000, scoped, tag = 'internal scratch']
  %s0 = inlined_call_operand.vmem [shape: f32[128,16], index: 0, kind: input, shape index: {}]
  %s1 = inlined_call_operand.vmem [shape: f32[16,128], index: 1, kind: input, shape index: {}]
  %s2 = inlined_call_operand.vmem [shape: f32[1,128], index: 2, kind: input, shape index: {}]
  %s3 = inlined_call_operand.vmem [shape: f32[1,128], index: 3, kind: input, shape index: {}]
  %s4 = inlined_call_operand.vmem [shape: f32[1,128], index: 4, kind: input, shape index: {}]
  %s5 = inlined_call_operand.hbm [shape: f32[128,128], index: 5, kind: output, shape index: {}]
  %s6 = sld [smem:[#allocation0]]
  $region30: #{tpu_custom_call.1} parent=0
    _
  %s8 = ssub.s32 1, %s6
  %s9 = scalar_select 0, %s8, %s6
  $region1: #{tpu_custom_call.1} parent=0
    #allocation2 [shape = 'u8[65536]{0}', space=vmem, size = 0x10000, scoped, tag = 'output window, operand 0, single buffered']
    #allocation3 [shape = 's32[1]{0}', space=sflag, size = 0x4, scoped, tag = 'scoped memory for tpu_custom_call.1']
    %10 = vsyncpa [#allocation3], 0
    // Predicated region
    $region2: #{tpu_custom_call.1} parent=1 // pred_check
      _
    $region3: #{tpu_custom_call.1} parent=1 // pred_check_branch
      %12 = sbr.rel (0) target = $region5
    $region4: #{tpu_custom_call.1} parent=1 // pred_region
      _
    $region5: #{tpu_custom_call.1} parent=1 // pred_fallthru
      _
    // Predicated region
    $region6: #{tpu_custom_call.1} parent=1 // pred_check
      _
    $region7: #{tpu_custom_call.1} parent=1 // pred_check_branch
      %14 = sbr.rel (0) target = $region9
    $region8: #{tpu_custom_call.1} parent=1 // pred_region
      _
    $region9: #{tpu_custom_call.1} parent=1 // pred_fallthru
      _
    // Predicated region
    $region10: #{tpu_custom_call.1} parent=1 // pred_check
      _
    $region11: #{tpu_custom_call.1} parent=1 // pred_check_branch
      %16 = sbr.rel (0) target = $region13
    $region12: #{tpu_custom_call.1} parent=1 // pred_region
      _
    $region13: #{tpu_custom_call.1} parent=1 // pred_fallthru
      _
    // Predicated region
    $region14: #{tpu_custom_call.1} parent=1 // pred_check
      _
    $region15: #{tpu_custom_call.1} parent=1 // pred_check_branch
      %18 = sbr.rel (0) target = $region17
    $region16: #{tpu_custom_call.1} parent=1 // pred_region
      _
    $region17: #{tpu_custom_call.1} parent=1 // pred_fallthru
      _
    // Predicated region
    $region18: #{tpu_custom_call.1} parent=1 // pred_check
      _
    $region19: #{tpu_custom_call.1} parent=1 // pred_check_branch
      %20 = sbr.rel (0) target = $region21
    $region20: #{tpu_custom_call.1} parent=1 // pred_region
      _
    $region21: #{tpu_custom_call.1} parent=1 // pred_fallthru
      _
    %v21 = vld [vmem:[%s0] sm:$0xff]
    %v22 = vld [vmem:[%s0 + $0x8] sm:$0xff]
    %v23 = vld [vmem:[%s0 + $0x10] sm:$0xff]
    %v24 = vld [vmem:[%s0 + $0x18] sm:$0xff]
    %v25 = vld [vmem:[%s0 + $0x20] sm:$0xff]
    %v26 = vld [vmem:[%s0 + $0x28] sm:$0xff]
    %v27 = vld [vmem:[%s0 + $0x30] sm:$0xff]
    %v28 = vld [vmem:[%s0 + $0x38] sm:$0xff]
    %v29 = vld [vmem:[%s0 + $0x40] sm:$0xff]
    %v30 = vld [vmem:[%s0 + $0x48] sm:$0xff]
    %v31 = vld [vmem:[%s0 + $0x50] sm:$0xff]
    %v32 = vld [vmem:[%s0 + $0x58] sm:$0xff]
    %v33 = vld [vmem:[%s0 + $0x60] sm:$0xff]
    %v34 = vld [vmem:[%s0 + $0x68] sm:$0xff]
    %v35 = vld [vmem:[%s0 + $0x70] sm:$0xff]
    %v36 = vld [vmem:[%s0 + $0x78] sm:$0xff]
    %v37 = vld [vmem:[%s1] sm:$0xff]
    %v38 = vld [vmem:[%s1 + $0x8] sm:$0xff]
    %v39 = vld [vmem:[%s2] sm:$0x1]
    %v41 = vlaneseq
    %v42 = vshrl.u32 %v41, 7
    %v43 = vsub.s32 0, %v42
    %v44 = vrot.slane %v39, %v43
    %vm46 = vcmask 130048
    %v48 = vsel %vm46, %v21, 0
    %v51 = vsel %vm46, %v22, 0
    %v54 = vsel %vm46, %v23, 0
    %v57 = vsel %vm46, %v24, 0
    %v60 = vsel %vm46, %v25, 0
    %v63 = vsel %vm46, %v26, 0
    %v66 = vsel %vm46, %v27, 0
    %v69 = vsel %vm46, %v28, 0
    %v72 = vsel %vm46, %v29, 0
    %v75 = vsel %vm46, %v30, 0
    %v78 = vsel %vm46, %v31, 0
    %v81 = vsel %vm46, %v32, 0
    %v84 = vsel %vm46, %v33, 0
    %v87 = vsel %vm46, %v34, 0
    %v90 = vsel %vm46, %v35, 0
    %v93 = vsel %vm46, %v36, 0
    %95 = vmatprep.subr.mxu0 0.0
    %96 = vmatpush1.msra.mxu0 0.0
    %97 = vmatprep.subr.mxu0 0.0
    %98 = vmatpush1.msra.mxu0 0.0
    %99 = vmatprep.subr.mxu0 0.0
    %100 = vmatpush1.msra.mxu0 0.0
    %101 = vmatprep.subr.mxu0 0.0
    %102 = vmatpush1.msra.mxu0 0.0
    %103 = vmatprep.subr.mxu0 0.0
    %104 = vmatpush1.msra.mxu0 0.0
    %105 = vmatprep.subr.mxu0 0.0
    %106 = vmatpush1.msra.mxu0 0.0
    %107 = vmatprep.subr.mxu0 0.0
    %108 = vmatpush1.msra.mxu0 0.0
    %109 = vmatprep.subr.mxu0 0.0
    %110 = vmatpush1.msra.mxu0 0.0
    %111 = vmatprep.subr.mxu0 0.0
    %112 = vmatpush1.msra.mxu0 0.0
    %113 = vmatprep.subr.mxu0 0.0
    %114 = vmatpush1.msra.mxu0 0.0
    %115 = vmatprep.subr.mxu0 0.0
    %116 = vmatpush1.msra.mxu0 0.0
    %117 = vmatprep.subr.mxu0 0.0
    %118 = vmatpush1.msra.mxu0 0.0
    %119 = vmatprep.subr.mxu0 0.0
    %120 = vmatpush1.msra.mxu0 0.0
    %121 = vmatprep.subr.mxu0 0.0
    %122 = vmatpush1.msra.mxu0 0.0
    %123 = vmatprep.subr.mxu0 0.0
    %124 = vmatpush1.msra.mxu0 %v38
    %125 = vmatprep.subr.mxu0 0.0
    %126 = vmatpush1.msra.mxu0 %v37
    %127 = vmatprep.subr.mxu0 0.0
    %128 = vmatpush2.msra.mxu0 0.0
    %129 = vmatprep.subr.mxu0 0.0
    %130 = vmatpush2.msra.mxu0 0.0
    %131 = vmatprep.subr.mxu0 0.0
    %132 = vmatpush2.msra.mxu0 0.0
    %133 = vmatprep.subr.mxu0 0.0
    %134 = vmatpush2.msra.mxu0 0.0
    %135 = vmatprep.subr.mxu0 0.0
    %136 = vmatpush2.msra.mxu0 0.0
    %137 = vmatprep.subr.mxu0 0.0
    %138 = vmatpush2.msra.mxu0 0.0
    %139 = vmatprep.subr.mxu0 0.0
    %140 = vmatpush2.msra.mxu0 0.0
    %141 = vmatprep.subr.mxu0 0.0
    %142 = vmatpush2.msra.mxu0 0.0
    %143 = vmatprep.subr.mxu0 0.0
    %144 = vmatpush2.msra.mxu0 0.0
    %145 = vmatprep.subr.mxu0 0.0
    %146 = vmatpush2.msra.mxu0 0.0
    %147 = vmatprep.subr.mxu0 0.0
    %148 = vmatpush2.msra.mxu0 0.0
    %149 = vmatprep.subr.mxu0 0.0
    %150 = vmatpush2.msra.mxu0 0.0
    %151 = vmatprep.subr.mxu0 0.0
    %152 = vmatpush2.msra.mxu0 0.0
    %153 = vmatprep.subr.mxu0 0.0
    %154 = vmatpush2.msra.mxu0 0.0
    %155 = vmatprep.subr.mxu0 0.0
    %156 = vmatpush2.msra.mxu0 0.0
    %157 = vmatprep.subr.mxu0 0.0
    %158 = vmatpush2.msra.mxu0 0.0
    %159 = vmatprep.mubr.f32.mxu0 0.0
    %160 = vmatmul.mubr.f32.gmra.mxu0 %v48
    %v161 = vpop.f32.mrf.mxu0
    %v162 = vadd.f32 %v44, %v161
    %v163 = vpop.f32.mrf.mxu0
    %164 = vmatprep.mubr.f32.mxu0 0.0
    %165 = vmatmul.mubr.f32.gmra.mxu0 %v51
    %v166 = vpop.f32.mrf.mxu0
    %v167 = vadd.f32 %v44, %v166
    %v168 = vpop.f32.mrf.mxu0
    %169 = vmatprep.mubr.f32.mxu0 0.0
    %170 = vmatmul.mubr.f32.gmra.mxu0 %v54
    %v171 = vpop.f32.mrf.mxu0
    %v172 = vadd.f32 %v44, %v171
    %v173 = vpop.f32.mrf.mxu0
    %174 = vmatprep.mubr.f32.mxu0 0.0
    %175 = vmatmul.mubr.f32.gmra.mxu0 %v57
    %v176 = vpop.f32.mrf.mxu0
    %v177 = vadd.f32 %v44, %v176
    %v178 = vpop.f32.mrf.mxu0
    %179 = vmatprep.mubr.f32.mxu0 0.0
    %180 = vmatmul.mubr.f32.gmra.mxu0 %v60
    %v181 = vpop.f32.mrf.mxu0
    %v182 = vadd.f32 %v44, %v181
    %v183 = vpop.f32.mrf.mxu0
    %184 = vmatprep.mubr.f32.mxu0 0.0
    %185 = vmatmul.mubr.f32.gmra.mxu0 %v63
    %v186 = vpop.f32.mrf.mxu0
    %v187 = vadd.f32 %v44, %v186
    %v188 = vpop.f32.mrf.mxu0
    %189 = vmatprep.mubr.f32.mxu0 0.0
    %190 = vmatmul.mubr.f32.gmra.mxu0 %v66
    %v191 = vpop.f32.mrf.mxu0
    %v192 = vadd.f32 %v44, %v191
    %v193 = vpop.f32.mrf.mxu0
    %194 = vmatprep.mubr.f32.mxu0 0.0
    %195 = vmatmul.mubr.f32.gmra.mxu0 %v69
    %v196 = vpop.f32.mrf.mxu0
    %v197 = vadd.f32 %v44, %v196
    %v198 = vpop.f32.mrf.mxu0
    %199 = vmatprep.mubr.f32.mxu0 0.0
    %200 = vmatmul.mubr.f32.gmra.mxu0 %v72
    %v201 = vpop.f32.mrf.mxu0
    %v202 = vadd.f32 %v44, %v201
    %v203 = vpop.f32.mrf.mxu0
    %204 = vmatprep.mubr.f32.mxu0 0.0
    %205 = vmatmul.mubr.f32.gmra.mxu0 %v75
    %v206 = vpop.f32.mrf.mxu0
    %v207 = vadd.f32 %v44, %v206
    %v208 = vpop.f32.mrf.mxu0
    %209 = vmatprep.mubr.f32.mxu0 0.0
    %210 = vmatmul.mubr.f32.gmra.mxu0 %v78
    %v211 = vpop.f32.mrf.mxu0
    %v212 = vadd.f32 %v44, %v211
    %v213 = vpop.f32.mrf.mxu0
    %214 = vmatprep.mubr.f32.mxu0 0.0
    %215 = vmatmul.mubr.f32.gmra.mxu0 %v81
    %v216 = vpop.f32.mrf.mxu0
    %v217 = vadd.f32 %v44, %v216
    %v218 = vpop.f32.mrf.mxu0
    %219 = vmatprep.mubr.f32.mxu0 0.0
    %220 = vmatmul.mubr.f32.gmra.mxu0 %v84
    %v221 = vpop.f32.mrf.mxu0
    %v222 = vadd.f32 %v44, %v221
    %v223 = vpop.f32.mrf.mxu0
    %224 = vmatprep.mubr.f32.mxu0 0.0
    %225 = vmatmul.mubr.f32.gmra.mxu0 %v87
    %v226 = vpop.f32.mrf.mxu0
    %v227 = vadd.f32 %v44, %v226
    %v228 = vpop.f32.mrf.mxu0
    %229 = vmatprep.mubr.f32.mxu0 0.0
    %230 = vmatmul.mubr.f32.gmra.mxu0 %v90
    %v231 = vpop.f32.mrf.mxu0
    %v232 = vadd.f32 %v44, %v231
    %v233 = vpop.f32.mrf.mxu0
    %234 = vmatprep.mubr.f32.mxu0 0.0
    %235 = vmatmul.mubr.f32.gmra.mxu0 %v93
    %v236 = vpop.f32.mrf.mxu0
    %v237 = vadd.f32 %v44, %v236
    %v238 = vpop.f32.mrf.mxu0
    %239 = vdwg.mxu0
    %vm240 = vcmp.ge.f32.partialorder %v162, 0.0
    %vm241 = vcmp.ge.f32.partialorder %v167, 0.0
    %vm242 = vcmp.ge.f32.partialorder %v172, 0.0
    %vm243 = vcmp.ge.f32.partialorder %v177, 0.0
    %vm244 = vcmp.ge.f32.partialorder %v182, 0.0
    %vm245 = vcmp.ge.f32.partialorder %v187, 0.0
    %vm246 = vcmp.ge.f32.partialorder %v192, 0.0
    %vm247 = vcmp.ge.f32.partialorder %v197, 0.0
    %vm248 = vcmp.ge.f32.partialorder %v202, 0.0
    %vm249 = vcmp.ge.f32.partialorder %v207, 0.0
    %vm250 = vcmp.ge.f32.partialorder %v212, 0.0
    %vm251 = vcmp.ge.f32.partialorder %v217, 0.0
    %vm252 = vcmp.ge.f32.partialorder %v222, 0.0
    %vm253 = vcmp.ge.f32.partialorder %v227, 0.0
    %vm254 = vcmp.ge.f32.partialorder %v232, 0.0
    %vm255 = vcmp.ge.f32.partialorder %v237, 0.0
    %v256 = vmul.f32 %v162, 0.2
    %v257 = vmul.f32 %v167, 0.2
    %v258 = vmul.f32 %v172, 0.2
    %v259 = vmul.f32 %v177, 0.2
    %v260 = vmul.f32 %v182, 0.2
    %v261 = vmul.f32 %v187, 0.2
    %v262 = vmul.f32 %v192, 0.2
    %v263 = vmul.f32 %v197, 0.2
    %v264 = vmul.f32 %v202, 0.2
    %v265 = vmul.f32 %v207, 0.2
    %v266 = vmul.f32 %v212, 0.2
    %v267 = vmul.f32 %v217, 0.2
    %v268 = vmul.f32 %v222, 0.2
    %v269 = vmul.f32 %v227, 0.2
    %v270 = vmul.f32 %v232, 0.2
    %v271 = vmul.f32 %v237, 0.2
    %v272 = vsel %vm240, %v162, %v256
    %v273 = vsel %vm241, %v167, %v257
    %v274 = vsel %vm242, %v172, %v258
    %v275 = vsel %vm243, %v177, %v259
    %v276 = vsel %vm244, %v182, %v260
    %v277 = vsel %vm245, %v187, %v261
    %v278 = vsel %vm246, %v192, %v262
    %v279 = vsel %vm247, %v197, %v263
    %v280 = vsel %vm248, %v202, %v264
    %v281 = vsel %vm249, %v207, %v265
    %v282 = vsel %vm250, %v212, %v266
    %v283 = vsel %vm251, %v217, %v267
    %v284 = vsel %vm252, %v222, %v268
    %v285 = vsel %vm253, %v227, %v269
    %v286 = vsel %vm254, %v232, %v270
    %v287 = vsel %vm255, %v237, %v271
    %v288 = vld [vmem:[%s3] sm:$0x1]
    %v290 = vlaneseq
    %v291 = vshrl.u32 %v290, 7
    %v292 = vsub.s32 0, %v291
    %v293 = vrot.slane %v288, %v292
    %v295 = vmul.f32 %v272, %v293
    %v296 = vmul.f32 %v273, %v293
    %v297 = vmul.f32 %v274, %v293
    %v298 = vmul.f32 %v275, %v293
    %v299 = vmul.f32 %v276, %v293
    %v300 = vmul.f32 %v277, %v293
    %v301 = vmul.f32 %v278, %v293
    %v302 = vmul.f32 %v279, %v293
    %v303 = vmul.f32 %v280, %v293
    %v304 = vmul.f32 %v281, %v293
    %v305 = vmul.f32 %v282, %v293
    %v306 = vmul.f32 %v283, %v293
    %v307 = vmul.f32 %v284, %v293
    %v308 = vmul.f32 %v285, %v293
    %v309 = vmul.f32 %v286, %v293
    %v310 = vmul.f32 %v287, %v293
    %v311 = vld [vmem:[%s4] sm:$0x1]
    %v313 = vlaneseq
    %v314 = vshrl.u32 %v313, 7
    %v315 = vsub.s32 0, %v314
    %v316 = vrot.slane %v311, %v315
    %v318 = vadd.f32 %v295, %v316
    %v319 = vadd.f32 %v296, %v316
    %v320 = vadd.f32 %v297, %v316
    %v321 = vadd.f32 %v298, %v316
    %v322 = vadd.f32 %v299, %v316
    %v323 = vadd.f32 %v300, %v316
    %v324 = vadd.f32 %v301, %v316
    %v325 = vadd.f32 %v302, %v316
    %v326 = vadd.f32 %v303, %v316
    %v327 = vadd.f32 %v304, %v316
    %v328 = vadd.f32 %v305, %v316
    %v329 = vadd.f32 %v306, %v316
    %v330 = vadd.f32 %v307, %v316
    %v331 = vadd.f32 %v308, %v316
    %v332 = vadd.f32 %v309, %v316
    %v333 = vadd.f32 %v310, %v316
    %334 = vst [vmem:[#allocation2] sm:$0xff] %v318
    %335 = vst [vmem:[#allocation2 + $0x8] sm:$0xff] %v319
    %336 = vst [vmem:[#allocation2 + $0x10] sm:$0xff] %v320
    %337 = vst [vmem:[#allocation2 + $0x18] sm:$0xff] %v321
    %338 = vst [vmem:[#allocation2 + $0x20] sm:$0xff] %v322
    %339 = vst [vmem:[#allocation2 + $0x28] sm:$0xff] %v323
    %340 = vst [vmem:[#allocation2 + $0x30] sm:$0xff] %v324
    %341 = vst [vmem:[#allocation2 + $0x38] sm:$0xff] %v325
    %342 = vst [vmem:[#allocation2 + $0x40] sm:$0xff] %v326
    %343 = vst [vmem:[#allocation2 + $0x48] sm:$0xff] %v327
    %344 = vst [vmem:[#allocation2 + $0x50] sm:$0xff] %v328
    %345 = vst [vmem:[#allocation2 + $0x58] sm:$0xff] %v329
    %346 = vst [vmem:[#allocation2 + $0x60] sm:$0xff] %v330
    %347 = vst [vmem:[#allocation2 + $0x68] sm:$0xff] %v331
    %348 = vst [vmem:[#allocation2 + $0x70] sm:$0xff] %v332
    %349 = vst [vmem:[#allocation2 + $0x78] sm:$0xff] %v333
    // Predicated region
    $region22: #{tpu_custom_call.1} parent=1 // pred_check
      _
    $region23: #{tpu_custom_call.1} parent=1 // pred_check_branch
      %351 = sbr.rel (0) target = $region25
    $region24: #{tpu_custom_call.1} parent=1 // pred_region
      %s353 = ssub.s32 2048, 2048
      %354 = vsyncadd [#allocation3], %s353
      %s355 = sshll.u32 [#allocation2], 4
      %s356 = int_to_ptr.vmem [resolvable:$true] %s355
      %361 = dma.vmem_to_hbm [thread:$0]  %s356, 2048, %s5, [#allocation3], 128, 128, 8
    $region25: #{tpu_custom_call.1} parent=1 // pred_fallthru
      _
    // Predicated region
    $region26: #{tpu_custom_call.1} parent=1 // pred_check
      _
    $region27: #{tpu_custom_call.1} parent=1 // pred_check_branch
      %363 = sbr.rel (0) target = $region29
    $region28: #{tpu_custom_call.1} parent=1 // pred_region
      %364 = dma.done [#allocation3], 2048
    $region29: #{tpu_custom_call.1} parent=1 // pred_fallthru
      _
    %365 = vsyncpa [#allocation3], 1

</llo_original>
